<compile_context>
chip_gen: v7x
topology: tpu7x:2x2x1
jax: 0.10.0
libtpu: 0.0.40
codegen_flags: <defaults>
</compile_context>

<pallas_src>
import functools

import jax
import jax.numpy as jnp
import numpy as np
from jax import lax
from jax.experimental import pallas as pl
from jax.experimental.pallas import tpu as pltpu


def _unbatch_pad_kernel(s_max, group, nbuf,
                        starts_ref, shifts_ref, counts_ref,   # scalar prefetch (SMEM)
                        src_hbm,                              # input (HBM, pl.ANY)
                        out_ref,                              # output block (group, s_max, D)
                        tail_buf, sems):                      # scratch: (2*s_max, D), DMA sems (nbuf,)
    b = pl.program_id(0)

    # (s_max, 1) iota; jnp.where broadcasts it across the D lanes. Hoisted out of loops.
    row_ids = lax.broadcasted_iota(jnp.int32, (s_max, 1), 0)
    zero = jnp.zeros((), dtype=out_ref.dtype)

    def retire(g):
        """Finalize the set issued for in-group index g on the direct path:
        wait for its DMA (landed straight in out_ref) and zero the padding rows."""
        s_idx = b * group + g
        cnt = counts_ref[s_idx]              # SMEM reads hoisted above the wait
        direct = shifts_ref[s_idx] == 0
        slot = g % nbuf

        @pl.when(direct)
        def _():
            # Same shape + same semaphore as the started copy -> wait() matches bytes.
            pltpu.make_async_copy(src_hbm.at[pl.ds(0, s_max), :],
                                  out_ref.at[g], sems.at[slot]).wait()
            out_ref[g] = jnp.where(row_ids < cnt, out_ref[g], zero)

    def body(g, carry):
        s_idx = b * group + g
        start = starts_ref[s_idx]
        shift = shifts_ref[s_idx]
        cnt = counts_ref[s_idx]
        slot = g % nbuf
        direct = shift == 0

        # Free this semaphore slot / finalize the set issued `nbuf` iterations ago,
        # keeping up to `nbuf` DMAs in flight.
        @pl.when(g >= nbuf)
        def _():
            retire(g - nbuf)

        @pl.when(direct)
        def _():
            # Common case: window is fully in bounds -> DMA straight into the output block.
            pltpu.make_async_copy(src_hbm.at[pl.ds(start, s_max), :],
                                  out_ref.at[g], sems.at[slot]).start()

        @pl.when(jnp.logical_not(direct))
        def _():
            # Clamped tail set: land the clamped window at a dynamic offset inside the
            # 2*s_max-row scratch so the set's valid rows always end at the static
            # window [s_max, 2*s_max). Start+wait+consume inline (rare: only the last
            # ~s_max rows' worth of sets), so the single tail_buf is never racy.
            cp = pltpu.make_async_copy(src_hbm.at[pl.ds(start, s_max), :],
                                       tail_buf.at[pl.ds(s_max - shift, s_max), :],
                                       sems.at[slot])
            cp.start()
            cp.wait()
            out_ref[g] = jnp.where(row_ids < cnt, tail_buf[s_max:, :], zero)

        return carry

    lax.fori_loop(0, group, body, 0)

    # Drain the in-flight window (last `nbuf` direct copies).
    for i in range(nbuf):
        retire(group - nbuf + i)


@functools.partial(jax.jit,
                   static_argnames=("num_sets", "s_max", "group", "nbuf", "vmem_limit"))
def _unbatch_and_pad_impl(src, batch, *, num_sets, s_max, group, nbuf, vmem_limit):
    N, D = src.shape

    # Per-set sizes and exclusive-prefix offsets (requires sorted/contiguous `batch`,
    # torch_geometric `unbatch` convention — unsorted input silently gives wrong output).
    counts_full = jax.ops.segment_sum(
        jnp.ones((N,), jnp.int32), batch, num_segments=num_sets).astype(jnp.int32)
    offsets = jnp.concatenate(
        [jnp.zeros((1,), jnp.int32), jnp.cumsum(counts_full)[:-1].astype(jnp.int32)])
    # Clamp so data and mask stay consistent if max_set_size < the largest set (truncation).
    counts = jnp.minimum(counts_full, s_max).astype(jnp.int32)

    # Mask computed on the XLA side (a lane-width-1 kernel output would force masked stores).
    masks = jnp.arange(s_max, dtype=jnp.int32)[None, :] < counts[:, None]

    # Only pad src when the *whole* input is smaller than one padded set (tiny copy);
    # otherwise the kernel reads clamped, always-in-bounds s_max-row windows.
    if N < s_max:
        src_in = jnp.pad(src, ((0, s_max - N), (0, 0)))
        n_eff = s_max
    else:
        src_in = src
        n_eff = N

    # Clamp each set's fixed s_max-row window to stay in bounds; `shift` is how far the
    # window was pulled back (0 for all sets except those starting in the last s_max rows).
    starts = jnp.minimum(offsets, n_eff - s_max).astype(jnp.int32)
    shifts = (offsets - starts).astype(jnp.int32)

    n_steps = pl.cdiv(num_sets, group)
    b_pad = n_steps * group
    if b_pad != num_sets:                      # fake tail sets: start=0, shift=0, cnt=0
        pad = b_pad - num_sets
        starts = jnp.pad(starts, (0, pad))
        shifts = jnp.pad(shifts, (0, pad))
        counts_k = jnp.pad(counts, (0, pad))
    else:
        counts_k = counts

    kernel = functools.partial(_unbatch_pad_kernel, s_max, group, nbuf)

    grid_spec = pltpu.PrefetchScalarGridSpec(
        num_scalar_prefetch=3,
        grid=(n_steps,),
        in_specs=[pl.BlockSpec(memory_space=pl.ANY)],      # raw HBM ref, manual DMA
        out_specs=pl.BlockSpec((group, s_max, D), lambda b, *_: (b, 0, 0)),
        scratch_shapes=[
            pltpu.VMEM((2 * s_max, D), src.dtype),         # realignment pad, clamped sets only
            pltpu.SemaphoreType.DMA((nbuf,)),
        ],
    )

    # Output emitted at exactly (num_sets, s_max, D): if the grid does not divide evenly,
    # the last block is a partial block and Pallas drops its out-of-bounds rows — no
    # trailing [:num_sets] slice (which would be a full extra copy of the output).
    padded = pl.pallas_call(
        kernel,
        grid_spec=grid_spec,
        out_shape=jax.ShapeDtypeStruct((num_sets, s_max, D), src.dtype),
        compiler_params=pltpu.CompilerParams(
            dimension_semantics=("parallel",),             # independent sets -> both TCs on v7x
            vmem_limit_bytes=vmem_limit,
        ),
    )(starts, shifts, counts_k, src_in)

    return padded, masks


def unbatch_and_pad(src, batch, num_sets, max_set_size=None):
    """Pallas implementation of UnbatchAndPad.forward.

    `batch` must be sorted/contiguous (torch_geometric `unbatch` convention).

    Returns (padded, masks):
      padded: (num_sets, S_max, D) float, zero-padded sets
      masks:  (num_sets, S_max)    bool, True where the entry is a real element
    """
    N, D = src.shape

    if max_set_size is None:
        # Same as the torch module with max_set_size=None: pad to the largest set.
        # TODO(synk): data-dependent static shape -> unavoidable device sync + per-S_max
        # recompile; prefer passing a static max_set_size.
        counts_tmp = jax.ops.segment_sum(
            jnp.ones((N,), jnp.int32), batch, num_segments=num_sets)
        s_max = int(jax.device_get(jnp.max(counts_tmp)))
    else:
        s_max = int(max_set_size)
    s_max = max(s_max, 1)
    # Perf note: multiples of 8 for s_max and 128 for D keep (8,128) tiles dense; odd
    # values are still correct (block dims equal the full array dims).

    itemsize = jnp.dtype(src.dtype).itemsize
    bytes_per_set = s_max * D * itemsize

    # Size the per-step group from the actual VMEM capacity of this generation
    # (128 MiB on v5e/v6e, 64 MiB on v7x) instead of a hard cap.
    try:
        vmem_cap = int(pltpu.get_tpu_info().vmem_capacity_bytes)
    except Exception:                                  # conservative fallback (v7x size)
        vmem_cap = 64 * 1024 * 1024
    vmem_limit = int(min(vmem_cap // 2, 64 * 1024 * 1024))   # scoped limit with headroom
    budget = vmem_limit // 2                                  # resident working-set target

    # Dominant resident allocation is the double-buffered output block
    # (2 * group * bytes_per_set) plus the (2*s_max, D) realignment pad.
    group = max(1, (budget - 2 * bytes_per_set) // (2 * bytes_per_set))
    if num_sets > 1:
        group = min(group, pl.cdiv(num_sets, 2))   # keep >= 2 grid steps (v7x 2 TensorCores)
    group = int(max(1, min(group, num_sets)))

    # Prefer a divisor of num_sets close to the budgeted group so the grid tiles the output
    # exactly (no wasted work in a ragged last block); otherwise partial-block drop handles it.
    if num_sets % group != 0:
        for d in range(group, max(group // 2, 1), -1):
            if num_sets % d == 0:
                group = d
                break

    nbuf = int(min(group, 8))                          # bounded in-flight DMA window

    return _unbatch_and_pad_impl(src, batch, num_sets=num_sets, s_max=s_max,
                                 group=group, nbuf=nbuf, vmem_limit=vmem_limit)


def _ref_unbatch_pad(src_np, sizes, s_max):
    num_sets = len(sizes)
    D = src_np.shape[1]
    ref_pad = np.zeros((num_sets, s_max, D), dtype=src_np.dtype)
    ref_msk = np.zeros((num_sets, s_max), dtype=bool)
    start = 0
    for b, sz in enumerate(sizes):
        n = min(sz, s_max)
        ref_pad[b, :n] = src_np[start:start + n]
        ref_msk[b, :n] = True
        start += sz
    return ref_pad, ref_msk


if __name__ == "__main__":
    key = jax.random.PRNGKey(0)
    D = 128

    cases = [
        # (set_sizes, max_set_size)
        ([5, 4, 7, 6], 8),        # even grid; direct path + one clamped tail set
        ([3, 7, 2, 6, 1], 8),     # clamped tail sets + ragged (partial) last output block
        ([5, 8, 3], None),        # max_set_size=None (derived from data)
    ]

    for sizes, mss in cases:
        num_sets = len(sizes)
        N = sum(sizes)
        key, k = jax.random.split(key)
        src = jax.random.normal(k, (N, D), dtype=jnp.float32)
        batch = jnp.asarray(np.repeat(np.arange(num_sets, dtype=np.int32), sizes))

        padded, masks = unbatch_and_pad(src, batch, num_sets, mss)
        jax.block_until_ready(padded)
        jax.block_until_ready(masks)

        s_max = max(sizes) if mss is None else mss
        ref_pad, ref_msk = _ref_unbatch_pad(np.asarray(src), sizes, s_max)
        np.testing.assert_allclose(np.asarray(padded), ref_pad, rtol=0, atol=0)
        np.testing.assert_array_equal(np.asarray(masks), ref_msk)

    print("KERNEL_OK")
</pallas_src>

<mosaic_0001>
module attributes {stable_mosaic.version = 11 : i64} {
  func.func @_unbatch_pad_kernel(%arg0: i32, %arg1: memref<4xi32, #tpu.memory_space<smem>>, %arg2: memref<4xi32, #tpu.memory_space<smem>>, %arg3: memref<4xi32, #tpu.memory_space<smem>>, %arg4: memref<22x128xf32, #tpu.memory_space<any>>, %arg5: memref<2x8x128xf32, #tpu.memory_space<vmem>>, %arg6: memref<16x128xf32, #tpu.memory_space<vmem>>, %arg7: memref<2x!tpu.dma_semaphore, #tpu.memory_space<semaphore_mem>>) attributes {dimension_semantics = [#tpu.dimension_semantics<parallel>], iteration_bounds = array<i64: 2>, scalar_prefetch = 3 : i64, scratch_operands = 2 : i64, tpu.core_type = #tpu.core_type<tc>, window_params = [{}, {transform_indices = @transform_1, window_bounds = array<i64: 2, 8, 128>}]} {
    %0 = tpu.iota {dimensions = array<i32: 0>} : vector<8x1xi32>
    %cst = arith.constant 0.000000e+00 : f32
    %c0_i32 = arith.constant 0 : i32
    %c2_i32 = arith.constant 2 : i32
    %1 = arith.addi %c0_i32, %c2_i32 : i32
    %c1_i32 = arith.constant 1 : i32
    scf.for %arg8 = %c0_i32 to %1 step %c1_i32  : i32 {
      %c2_i32_11 = arith.constant 2 : i32
      %20 = arith.muli %arg0, %c2_i32_11 : i32
      %21 = arith.addi %20, %arg8 : i32
      %22 = arith.index_cast %21 : i32 to index
      %23 = memref.load %arg1[%22] : memref<4xi32, #tpu.memory_space<smem>>
      %24 = arith.index_cast %21 : i32 to index
      %25 = memref.load %arg2[%24] : memref<4xi32, #tpu.memory_space<smem>>
      %26 = arith.index_cast %21 : i32 to index
      %27 = memref.load %arg3[%26] : memref<4xi32, #tpu.memory_space<smem>>
      %c2_i32_12 = arith.constant 2 : i32
      %c0_i32_13 = arith.constant 0 : i32
      %28 = arith.cmpi eq, %c2_i32_12, %c0_i32_13 : i32
      %c1_i32_14 = arith.constant 1 : i32
      %29 = arith.select %28, %c1_i32_14, %c2_i32_12 : i32
      %30 = arith.remsi %arg8, %29 : i32
      %c0_i32_15 = arith.constant 0 : i32
      %31 = arith.cmpi ne, %30, %c0_i32_15 : i32
      %c0_i32_16 = arith.constant 0 : i32
      %32 = arith.cmpi slt, %30, %c0_i32_16 : i32
      %c0_i32_17 = arith.constant 0 : i32
      %33 = arith.cmpi slt, %29, %c0_i32_17 : i32
      %34 = arith.xori %32, %33 : i1
      %35 = arith.andi %34, %31 : i1
      %36 = arith.addi %30, %29 : i32
      %37 = arith.select %35, %36, %30 : i32
      %c0_i32_18 = arith.constant 0 : i32
      %38 = arith.cmpi eq, %25, %c0_i32_18 : i32
      %c2_i32_19 = arith.constant 2 : i32
      %39 = arith.cmpi sge, %arg8, %c2_i32_19 : i32
      %40 = arith.extui %39 : i1 to i32
      %c0_i32_20 = arith.constant 0 : i32
      %41 = arith.cmpi ne, %40, %c0_i32_20 : i32
      scf.if %41 {
        %c2_i32_23 = arith.constant 2 : i32
        %47 = arith.subi %arg8, %c2_i32_23 : i32
        %c2_i32_24 = arith.constant 2 : i32
        %48 = arith.muli %arg0, %c2_i32_24 : i32
        %49 = arith.addi %48, %47 : i32
        %50 = arith.index_cast %49 : i32 to index
        %51 = memref.load %arg3[%50] : memref<4xi32, #tpu.memory_space<smem>>
        %52 = arith.index_cast %49 : i32 to index
        %53 = memref.load %arg2[%52] : memref<4xi32, #tpu.memory_space<smem>>
        %c0_i32_25 = arith.constant 0 : i32
        %54 = arith.cmpi eq, %53, %c0_i32_25 : i32
        %c2_i32_26 = arith.constant 2 : i32
        %c0_i32_27 = arith.constant 0 : i32
        %55 = arith.cmpi eq, %c2_i32_26, %c0_i32_27 : i32
        %c1_i32_28 = arith.constant 1 : i32
        %56 = arith.select %55, %c1_i32_28, %c2_i32_26 : i32
        %57 = arith.remsi %47, %56 : i32
        %c0_i32_29 = arith.constant 0 : i32
        %58 = arith.cmpi ne, %57, %c0_i32_29 : i32
        %c0_i32_30 = arith.constant 0 : i32
        %59 = arith.cmpi slt, %57, %c0_i32_30 : i32
        %c0_i32_31 = arith.constant 0 : i32
        %60 = arith.cmpi slt, %56, %c0_i32_31 : i32
        %61 = arith.xori %59, %60 : i1
        %62 = arith.andi %61, %58 : i1
        %63 = arith.addi %57, %56 : i32
        %64 = arith.select %62, %63, %57 : i32
        %65 = arith.extui %54 : i1 to i32
        %c0_i32_32 = arith.constant 0 : i32
        %66 = arith.cmpi ne, %65, %c0_i32_32 : i32
        scf.if %66 {
          %c0_i32_33 = arith.constant 0 : i32
          %c0_i32_34 = arith.constant 0 : i32
          %67 = tpu.memref_slice %arg4[%c0_i32_33, %c0_i32_34] : memref<22x128xf32, #tpu.memory_space<any>> -> memref<8x128xf32, #tpu.memory_space<any>>
          %c0_i32_35 = arith.constant 0 : i32
          %c0_i32_36 = arith.constant 0 : i32
          %68 = tpu.memref_slice %arg5[%47, %c0_i32_35, %c0_i32_36] : memref<2x8x128xf32, #tpu.memory_space<vmem>> -> memref<1x8x128xf32, #tpu.memory_space<vmem>>
          %69 = tpu.memref_squeeze %68 : memref<1x8x128xf32, #tpu.memory_space<vmem>> -> memref<8x128xf32, #tpu.memory_space<vmem>>
          %70 = tpu.memref_slice %arg7[%64] : memref<2x!tpu.dma_semaphore, #tpu.memory_space<semaphore_mem>> -> memref<1x!tpu.dma_semaphore, #tpu.memory_space<semaphore_mem>>
          %71 = tpu.memref_squeeze %70 : memref<1x!tpu.dma_semaphore, #tpu.memory_space<semaphore_mem>> -> memref<!tpu.dma_semaphore, #tpu.memory_space<semaphore_mem>>
          tpu.wait_dma2 semaphore(%71 : memref<!tpu.dma_semaphore, #tpu.memory_space<semaphore_mem>>) src(%67 : memref<8x128xf32, #tpu.memory_space<any>>) dst(%69 : memref<8x128xf32, #tpu.memory_space<vmem>>)
          %72 = vector.broadcast %51 : i32 to vector<8x1xi32>
          %73 = arith.cmpi slt, %0, %72 : vector<8x1xi32>
          %74 = arith.index_cast %47 : i32 to index
          %c0 = arith.constant 0 : index
          %c0_37 = arith.constant 0 : index
          %75 = vector.load %arg5[%74, %c0, %c0_37] : memref<2x8x128xf32, #tpu.memory_space<vmem>>, vector<1x8x128xf32>
          %76 = vector.shape_cast %75 : vector<1x8x128xf32> to vector<8x128xf32>
          %77 = vector.shape_cast %73 : vector<8x1xi1> to vector<8x1xi1>
          %78 = vector.broadcast %77 : vector<8x1xi1> to vector<8x128xi1>
          %79 = vector.broadcast %cst : f32 to vector<8x128xf32>
          %80 = arith.select %78, %76, %79 : vector<8x128xi1>, vector<8x128xf32>
          %81 = arith.index_cast %47 : i32 to index
          %c0_38 = arith.constant 0 : index
          %c0_39 = arith.constant 0 : index
          %82 = vector.load %arg5[%81, %c0_38, %c0_39] : memref<2x8x128xf32, #tpu.memory_space<vmem>>, vector<1x8x128xf32>
          %83 = vector.shape_cast %82 : vector<1x8x128xf32> to vector<8x128xf32>
          %84 = vector.shape_cast %80 : vector<8x128xf32> to vector<1x8x128xf32>
          tpu.vector_store %arg5[%81, %c0_38, %c0_39], %84 {strides = array<i32>} : memref<2x8x128xf32, #tpu.memory_space<vmem>>, vector<1x8x128xf32>,
        } else {
        }
      } else {
      }
      %42 = arith.extui %38 : i1 to i32
      %c0_i32_21 = arith.constant 0 : i32
      %43 = arith.cmpi ne, %42, %c0_i32_21 : i32
      scf.if %43 {
        %c0_i32_23 = arith.constant 0 : i32
        %47 = tpu.memref_slice %arg4[%23, %c0_i32_23] : memref<22x128xf32, #tpu.memory_space<any>> -> memref<8x128xf32, #tpu.memory_space<any>>
        %c0_i32_24 = arith.constant 0 : i32
        %c0_i32_25 = arith.constant 0 : i32
        %48 = tpu.memref_slice %arg5[%arg8, %c0_i32_24, %c0_i32_25] : memref<2x8x128xf32, #tpu.memory_space<vmem>> -> memref<1x8x128xf32, #tpu.memory_space<vmem>>
        %49 = tpu.memref_squeeze %48 : memref<1x8x128xf32, #tpu.memory_space<vmem>> -> memref<8x128xf32, #tpu.memory_space<vmem>>
        %50 = tpu.memref_slice %arg7[%37] : memref<2x!tpu.dma_semaphore, #tpu.memory_space<semaphore_mem>> -> memref<1x!tpu.dma_semaphore, #tpu.memory_space<semaphore_mem>>
        %51 = tpu.memref_squeeze %50 : memref<1x!tpu.dma_semaphore, #tpu.memory_space<semaphore_mem>> -> memref<!tpu.dma_semaphore, #tpu.memory_space<semaphore_mem>>
        tpu.enqueue_dma source(%47 : memref<8x128xf32, #tpu.memory_space<any>>) target(%49 : memref<8x128xf32, #tpu.memory_space<vmem>>) target_semaphore(%51 : memref<!tpu.dma_semaphore, #tpu.memory_space<semaphore_mem>>)
      } else {
      }
      %true = arith.constant true
      %44 = arith.xori %38, %true : i1
      %45 = arith.extui %44 : i1 to i32
      %c0_i32_22 = arith.constant 0 : i32
      %46 = arith.cmpi ne, %45, %c0_i32_22 : i32
      scf.if %46 {
        %c8_i32 = arith.constant 8 : i32
        %47 = arith.subi %c8_i32, %25 : i32
        %c0_i32_23 = arith.constant 0 : i32
        %48 = tpu.memref_slice %arg4[%23, %c0_i32_23] : memref<22x128xf32, #tpu.memory_space<any>> -> memref<8x128xf32, #tpu.memory_space<any>>
        %c0_i32_24 = arith.constant 0 : i32
        %49 = tpu.memref_slice %arg6[%47, %c0_i32_24] : memref<16x128xf32, #tpu.memory_space<vmem>> -> memref<8x128xf32, #tpu.memory_space<vmem>>
        %50 = tpu.memref_slice %arg7[%37] : memref<2x!tpu.dma_semaphore, #tpu.memory_space<semaphore_mem>> -> memref<1x!tpu.dma_semaphore, #tpu.memory_space<semaphore_mem>>
        %51 = tpu.memref_squeeze %50 : memref<1x!tpu.dma_semaphore, #tpu.memory_space<semaphore_mem>> -> memref<!tpu.dma_semaphore, #tpu.memory_space<semaphore_mem>>
        tpu.enqueue_dma source(%48 : memref<8x128xf32, #tpu.memory_space<any>>) target(%49 : memref<8x128xf32, #tpu.memory_space<vmem>>) target_semaphore(%51 : memref<!tpu.dma_semaphore, #tpu.memory_space<semaphore_mem>>)
        %c0_i32_25 = arith.constant 0 : i32
        %52 = tpu.memref_slice %arg4[%23, %c0_i32_25] : memref<22x128xf32, #tpu.memory_space<any>> -> memref<8x128xf32, #tpu.memory_space<any>>
        %c0_i32_26 = arith.constant 0 : i32
        %53 = tpu.memref_slice %arg6[%47, %c0_i32_26] : memref<16x128xf32, #tpu.memory_space<vmem>> -> memref<8x128xf32, #tpu.memory_space<vmem>>
        %54 = tpu.memref_slice %arg7[%37] : memref<2x!tpu.dma_semaphore, #tpu.memory_space<semaphore_mem>> -> memref<1x!tpu.dma_semaphore, #tpu.memory_space<semaphore_mem>>
        %55 = tpu.memref_squeeze %54 : memref<1x!tpu.dma_semaphore, #tpu.memory_space<semaphore_mem>> -> memref<!tpu.dma_semaphore, #tpu.memory_space<semaphore_mem>>
        tpu.wait_dma2 semaphore(%55 : memref<!tpu.dma_semaphore, #tpu.memory_space<semaphore_mem>>) src(%52 : memref<8x128xf32, #tpu.memory_space<any>>) dst(%53 : memref<8x128xf32, #tpu.memory_space<vmem>>)
        %56 = vector.broadcast %27 : i32 to vector<8x1xi32>
        %57 = arith.cmpi slt, %0, %56 : vector<8x1xi32>
        %c8 = arith.constant 8 : index
        %c0 = arith.constant 0 : index
        %58 = vector.load %arg6[%c8, %c0] : memref<16x128xf32, #tpu.memory_space<vmem>>, vector<8x128xf32>
        %59 = vector.shape_cast %57 : vector<8x1xi1> to vector<8x1xi1>
        %60 = vector.broadcast %59 : vector<8x1xi1> to vector<8x128xi1>
        %61 = vector.broadcast %cst : f32 to vector<8x128xf32>
        %62 = arith.select %60, %58, %61 : vector<8x128xi1>, vector<8x128xf32>
        %63 = arith.index_cast %arg8 : i32 to index
        %c0_27 = arith.constant 0 : index
        %c0_28 = arith.constant 0 : index
        %64 = vector.load %arg5[%63, %c0_27, %c0_28] : memref<2x8x128xf32, #tpu.memory_space<vmem>>, vector<1x8x128xf32>
        %65 = vector.shape_cast %64 : vector<1x8x128xf32> to vector<8x128xf32>
        %66 = vector.shape_cast %62 : vector<8x128xf32> to vector<1x8x128xf32>
        tpu.vector_store %arg5[%63, %c0_27, %c0_28], %66 {strides = array<i32>} : memref<2x8x128xf32, #tpu.memory_space<vmem>>, vector<1x8x128xf32>,
      } else {
      }
    }
    %c2_i32_0 = arith.constant 2 : i32
    %c2_i32_1 = arith.constant 2 : i32
    %2 = arith.muli %arg0, %c2_i32_1 : i32
    %c0_i32_2 = arith.constant 0 : i32
    %3 = arith.addi %2, %c0_i32_2 : i32
    %4 = arith.index_cast %3 : i32 to index
    %5 = memref.load %arg3[%4] : memref<4xi32, #tpu.memory_space<smem>>
    %6 = arith.index_cast %3 : i32 to index
    %7 = memref.load %arg2[%6] : memref<4xi32, #tpu.memory_space<smem>>
    %c0_i32_3 = arith.constant 0 : i32
    %8 = arith.cmpi eq, %7, %c0_i32_3 : i32
    %9 = arith.extui %8 : i1 to i32
    %cst_4 = arith.constant 0.000000e+00 : f32
    %c0_i32_5 = arith.constant 0 : i32
    %10 = arith.cmpi ne, %9, %c0_i32_5 : i32
    scf.if %10 {
      %c0_i32_11 = arith.constant 0 : i32
      %c0_i32_12 = arith.constant 0 : i32
      %c0_i32_13 = arith.constant 0 : i32
      %c0_i32_14 = arith.constant 0 : i32
      %20 = tpu.memref_slice %arg4[%c0_i32_13, %c0_i32_14] : memref<22x128xf32, #tpu.memory_space<any>> -> memref<8x128xf32, #tpu.memory_space<any>>
      %c0_i32_15 = arith.constant 0 : i32
      %c0_i32_16 = arith.constant 0 : i32
      %21 = tpu.memref_slice %arg5[%c0_i32_11, %c0_i32_15, %c0_i32_16] : memref<2x8x128xf32, #tpu.memory_space<vmem>> -> memref<1x8x128xf32, #tpu.memory_space<vmem>>
      %22 = tpu.memref_squeeze %21 : memref<1x8x128xf32, #tpu.memory_space<vmem>> -> memref<8x128xf32, #tpu.memory_space<vmem>>
      %23 = tpu.memref_slice %arg7[%c0_i32_12] : memref<2x!tpu.dma_semaphore, #tpu.memory_space<semaphore_mem>> -> memref<1x!tpu.dma_semaphore, #tpu.memory_space<semaphore_mem>>
      %24 = tpu.memref_squeeze %23 : memref<1x!tpu.dma_semaphore, #tpu.memory_space<semaphore_mem>> -> memref<!tpu.dma_semaphore, #tpu.memory_space<semaphore_mem>>
      tpu.wait_dma2 semaphore(%24 : memref<!tpu.dma_semaphore, #tpu.memory_space<semaphore_mem>>) src(%20 : memref<8x128xf32, #tpu.memory_space<any>>) dst(%22 : memref<8x128xf32, #tpu.memory_space<vmem>>)
      %25 = vector.broadcast %5 : i32 to vector<8x1xi32>
      %26 = arith.cmpi slt, %0, %25 : vector<8x1xi32>
      %c0 = arith.constant 0 : index
      %c0_17 = arith.constant 0 : index
      %c0_18 = arith.constant 0 : index
      %27 = vector.load %arg5[%c0, %c0_17, %c0_18] : memref<2x8x128xf32, #tpu.memory_space<vmem>>, vector<1x8x128xf32>
      %28 = vector.shape_cast %27 : vector<1x8x128xf32> to vector<8x128xf32>
      %29 = vector.shape_cast %26 : vector<8x1xi1> to vector<8x1xi1>
      %30 = vector.broadcast %29 : vector<8x1xi1> to vector<8x128xi1>
      %31 = vector.broadcast %cst_4 : f32 to vector<8x128xf32>
      %32 = arith.select %30, %28, %31 : vector<8x128xi1>, vector<8x128xf32>
      %c0_19 = arith.constant 0 : index
      %c0_20 = arith.constant 0 : index
      %c0_21 = arith.constant 0 : index
      %33 = vector.load %arg5[%c0_19, %c0_20, %c0_21] : memref<2x8x128xf32, #tpu.memory_space<vmem>>, vector<1x8x128xf32>
      %34 = vector.shape_cast %33 : vector<1x8x128xf32> to vector<8x128xf32>
      %35 = vector.shape_cast %32 : vector<8x128xf32> to vector<1x8x128xf32>
      tpu.vector_store %arg5[%c0_19, %c0_20, %c0_21], %35 {strides = array<i32>} : memref<2x8x128xf32, #tpu.memory_space<vmem>>, vector<1x8x128xf32>,
    } else {
    }
    %c2_i32_6 = arith.constant 2 : i32
    %11 = arith.muli %arg0, %c2_i32_6 : i32
    %c1_i32_7 = arith.constant 1 : i32
    %12 = arith.addi %11, %c1_i32_7 : i32
    %13 = arith.index_cast %12 : i32 to index
    %14 = memref.load %arg3[%13] : memref<4xi32, #tpu.memory_space<smem>>
    %15 = arith.index_cast %12 : i32 to index
    %16 = memref.load %arg2[%15] : memref<4xi32, #tpu.memory_space<smem>>
    %c0_i32_8 = arith.constant 0 : i32
    %17 = arith.cmpi eq, %16, %c0_i32_8 : i32
    %18 = arith.extui %17 : i1 to i32
    %cst_9 = arith.constant 0.000000e+00 : f32
    %c0_i32_10 = arith.constant 0 : i32
    %19 = arith.cmpi ne, %18, %c0_i32_10 : i32
    scf.if %19 {
      %c1_i32_11 = arith.constant 1 : i32
      %c1_i32_12 = arith.constant 1 : i32
      %c0_i32_13 = arith.constant 0 : i32
      %c0_i32_14 = arith.constant 0 : i32
      %20 = tpu.memref_slice %arg4[%c0_i32_13, %c0_i32_14] : memref<22x128xf32, #tpu.memory_space<any>> -> memref<8x128xf32, #tpu.memory_space<any>>
      %c0_i32_15 = arith.constant 0 : i32
      %c0_i32_16 = arith.constant 0 : i32
      %21 = tpu.memref_slice %arg5[%c1_i32_11, %c0_i32_15, %c0_i32_16] : memref<2x8x128xf32, #tpu.memory_space<vmem>> -> memref<1x8x128xf32, #tpu.memory_space<vmem>>
      %22 = tpu.memref_squeeze %21 : memref<1x8x128xf32, #tpu.memory_space<vmem>> -> memref<8x128xf32, #tpu.memory_space<vmem>>
      %23 = tpu.memref_slice %arg7[%c1_i32_12] : memref<2x!tpu.dma_semaphore, #tpu.memory_space<semaphore_mem>> -> memref<1x!tpu.dma_semaphore, #tpu.memory_space<semaphore_mem>>
      %24 = tpu.memref_squeeze %23 : memref<1x!tpu.dma_semaphore, #tpu.memory_space<semaphore_mem>> -> memref<!tpu.dma_semaphore, #tpu.memory_space<semaphore_mem>>
      tpu.wait_dma2 semaphore(%24 : memref<!tpu.dma_semaphore, #tpu.memory_space<semaphore_mem>>) src(%20 : memref<8x128xf32, #tpu.memory_space<any>>) dst(%22 : memref<8x128xf32, #tpu.memory_space<vmem>>)
      %25 = vector.broadcast %14 : i32 to vector<8x1xi32>
      %26 = arith.cmpi slt, %0, %25 : vector<8x1xi32>
      %c1 = arith.constant 1 : index
      %c0 = arith.constant 0 : index
      %c0_17 = arith.constant 0 : index
      %27 = vector.load %arg5[%c1, %c0, %c0_17] : memref<2x8x128xf32, #tpu.memory_space<vmem>>, vector<1x8x128xf32>
      %28 = vector.shape_cast %27 : vector<1x8x128xf32> to vector<8x128xf32>
      %29 = vector.shape_cast %26 : vector<8x1xi1> to vector<8x1xi1>
      %30 = vector.broadcast %29 : vector<8x1xi1> to vector<8x128xi1>
      %31 = vector.broadcast %cst_9 : f32 to vector<8x128xf32>
      %32 = arith.select %30, %28, %31 : vector<8x128xi1>, vector<8x128xf32>
      %c1_18 = arith.constant 1 : index
      %c0_19 = arith.constant 0 : index
      %c0_20 = arith.constant 0 : index
      %33 = vector.load %arg5[%c1_18, %c0_19, %c0_20] : memref<2x8x128xf32, #tpu.memory_space<vmem>>, vector<1x8x128xf32>
      %34 = vector.shape_cast %33 : vector<1x8x128xf32> to vector<8x128xf32>
      %35 = vector.shape_cast %32 : vector<8x128xf32> to vector<1x8x128xf32>
      tpu.vector_store %arg5[%c1_18, %c0_19, %c0_20], %35 {strides = array<i32>} : memref<2x8x128xf32, #tpu.memory_space<vmem>>, vector<1x8x128xf32>,
    } else {
    }
    return
  }
  func.func @transform_1(%arg0: i32, %arg1: memref<4xi32, #tpu.memory_space<smem>>, %arg2: memref<4xi32, #tpu.memory_space<smem>>, %arg3: memref<4xi32, #tpu.memory_space<smem>>) -> (i32, i32, i32) {
    %c0_i32 = arith.constant 0 : i32
    %c0_i32_0 = arith.constant 0 : i32
    %c0_i32_1 = arith.constant 0 : i32
    return %arg0, %c0_i32, %c0_i32_0 : i32, i32, i32
  }
}

</mosaic_0001>

<llo_original>
// kernel: _unbatch_and_pad_impl.1
$region0: #{_unbatch_and_pad_impl.1}
  #allocation0 [shape = 'u32[]', space=smem, size = 0x4, offset = 0x4, fixed_abs, tag = 'smem constant byte address 0x4 - core index']
  #allocation1 [shape = 'u32[144,128]{1,0:T(1,128)}', space=vmem, size = 0x12000, scoped, tag = 'internal scratch']
  #allocation2 [shape = 'f32[16,128]{1,0:T(8,128)}', space=vmem, size = 0x2000, scoped, tag = 'scratch operand']
  #allocation3 [shape = 's32[2]{0}', space=sflag, size = 0x8, scoped, tag = 'scratch operand']
  #allocation4 [shape = 's32[1]{0}', space=sflag, size = 0x4, scoped, tag = 'scoped memory for _unbatch_and_pad_impl.1']
  #allocation5 [shape = 'u8[512]{0}', space=smem, size = 0x200, scoped, tag = 'prefetched SMEM operand 0']
  #allocation6 [shape = 'u8[512]{0}', space=smem, size = 0x200, scoped, tag = 'prefetched SMEM operand 1']
  #allocation7 [shape = 'u8[512]{0}', space=smem, size = 0x200, scoped, tag = 'prefetched SMEM operand 2']
  #allocation10 [shape = 's32[]', space=sflag, size = 0x4, offset = 0, fixed_abs, tag = 'sflag constant byte address 0x0 - dummy sync flag']
  #allocation11 [shape = 's32[]', space=sflag, size = 0x4, offset = 0, fixed_abs, tag = 'sflag constant byte address 0x0 - dummy sync flag']
  %s0 = inlined_call_operand.vmem [shape: s32[4], index: 0, kind: input, shape index: {}]
  %s1 = inlined_call_operand.vmem [shape: s32[4], index: 1, kind: input, shape index: {}]
  %s2 = inlined_call_operand.vmem [shape: s32[4], index: 2, kind: input, shape index: {}]
  %s3 = inlined_call_operand.vmem [shape: f32[22,128], index: 3, kind: input, shape index: {}]
  %s4 = inlined_call_operand.hbm [shape: f32[4,8,128], index: 4, kind: output, shape index: {}]
  %s5 = sld [smem:[#allocation0]]
  $region124: #{_unbatch_and_pad_impl.1} parent=0
    _
  %s7 = ssub.s32 1, %s5
  %s8 = scalar_select 0, %s7, %s5
  %s9 = sshll.u32 %s0, 4
  %s10 = int_to_ptr.vmem [resolvable:$true] %s9
  %12 = dma.vmem_to_smem %s10, 16, [#allocation5], [#allocation4]
  %s13 = sshll.u32 %s1, 4
  %s14 = int_to_ptr.vmem [resolvable:$true] %s13
  %16 = dma.vmem_to_smem %s14, 16, [#allocation6], [#allocation4]
  %s17 = sshll.u32 %s2, 4
  %s18 = int_to_ptr.vmem [resolvable:$true] %s17
  %20 = dma.vmem_to_smem %s18, 16, [#allocation7], [#allocation4]
  %21 = dma.done [#allocation4], 48
  %22 = sfence
  $region1: #{_unbatch_and_pad_impl.1} parent=0
    #allocation8 [shape = 'u8[16384]{0}', space=vmem, size = 0x4000, scoped, tag = 'output window, operand 0']
    #allocation9 [shape = 's32[2]{0}', space=sflag, size = 0x8, scoped, tag = 'scoped memory for _unbatch_and_pad_impl.1']
    %23 = vsyncpa [#allocation9], 0
    %s24 = scalar_lea.sflag [#allocation9], 1
    %25 = vsyncpa %s24, 0
    loop: start=0, step=1, limit=3
    $region2: #{_unbatch_and_pad_impl.1} parent=1 // loop_pre_header
      _
    $region3: #{_unbatch_and_pad_impl.1} parent=1 // loop_header
      %s27 = sphi 0, %s31
      %p28 = scmp.ge.s32.totalorder %s27, 3
      %s36 = sphi 0, %s38
      %s39 = sphi 0, %s36
      %s49 = sphi 0, %s39
    $region4: #{_unbatch_and_pad_impl.1} parent=1 // loop_header_branch
      %30 = sbr.rel (%p28) target = $region8
    $region5: #{_unbatch_and_pad_impl.1} parent=1 // loop_body
      %s32 = ssub.s32 %s27, 1
      %s33 = sadd.s32 %s27, 1
      %s34 = ssub.s32 %s27, %s33
      %p35 = scmp.eq.s32.totalorder %s34, 0
      %s37 = sadd.s32 %s36, 1
      %s38 = scalar_select %p35, %s36, %s37
      %p40 = pneg %p35
      %p41 = scmp.eq.s32.totalorder %s27, 1
      %p42 = por %p40, %p41
      %p43 = scmp.ne.s32.totalorder %s36, %s39
      %p44 = scmp.eq.s32.totalorder %s27, 0
      %p45 = por %p43, %p44
      %p46 = scmp.ne.s32.totalorder %s36, %s39
      %p47 = scmp.eq.s32.totalorder %s32, 1
      %p48 = por %p46, %p47
      %p50 = scmp.ne.s32.totalorder %s39, %s49
      %p51 = scmp.eq.s32.totalorder %s32, 0
      %p52 = por %p50, %p51
      %p53 = scmp.lt.s32.totalorder %s27, 2
      // Predicated region
      $region9: #{_unbatch_and_pad_impl.1} parent=5 // pred_check
        %p54 = pneg %p53
      $region10: #{_unbatch_and_pad_impl.1} parent=5 // pred_check_branch
        %56 = sbr.rel (%p54) target = $region12
      $region11: #{_unbatch_and_pad_impl.1} parent=5 // pred_region
        %p57 = pneg %p45
        %p58 = pneg %p42
        %s59 = sand.u32 %s36, 1
        %s60 = scalar_lea.sflag [#allocation9], %s59
        %s61 = sand.u32 %s36, 1
        %s62 = smul.addr %s61, 16
        %s63 = scalar_lea.vmem [#allocation8], %s62
        %s64 = smul.u32 2, %s27
        %v65 = vlaneseq
        %v66 = vshrl.u32 %v65, 7
        loop: start=0, step=1, limit=2
        $region13: #{_unbatch_and_pad_impl.1} parent=11 // loop_pre_header
          _
        $region14: #{_unbatch_and_pad_impl.1} parent=11 // loop_header
          %s68 = sphi 0, %s72
          %p69 = scmp.ge.s32.totalorder %s68, 2
        $region15: #{_unbatch_and_pad_impl.1} parent=11 // loop_header_branch
          %71 = sbr.rel (%p69) target = $region19
        $region16: #{_unbatch_and_pad_impl.1} parent=11 // loop_body
          %s73 = smul.u32 %s27, 2
          %s74 = sadd.s32 %s73, %s68
          %s75 = sld [smem:[#allocation5 + %s74]]
          %s76 = sld [smem:[#allocation6 + %s74]]
          %s77 = sld [smem:[#allocation7 + %s74]]
          %p78 = scmp.lt.s32.totalorder %s68, 0
          %s79 = ssub.s32 0, %s68
          %s80 = scalar_select %p78, %s79, %s68
          %s81 = sand.u32 %s80, 1
          %s82 = ssub.s32 0, %s81
          %s83 = scalar_select %p78, %s82, %s81
          %p84 = scmp.ne.s32.totalorder %s83, 0
          %p85 = scmp.lt.s32.totalorder %s83, 0
          %p86 = pnand %p85, %p84
          %p87 = pneg %p86
          %s88 = sadd.s32 %s83, 2
          %s89 = scalar_select %p87, %s88, %s83
          %p90 = scmp.eq.s32.totalorder %s76, 0
          %p91 = scmp.ge.s32.totalorder %s68, 2
          // Predicated region
          $region20: #{_unbatch_and_pad_impl.1} parent=16 // pred_check
            %p92 = pneg %p91
          $region21: #{_unbatch_and_pad_impl.1} parent=16 // pred_check_branch
            %94 = sbr.rel (%p92) target = $region23
          $region22: #{_unbatch_and_pad_impl.1} parent=16 // pred_region
            %s95 = ssub.s32 %s68, 2
            %s96 = sadd.s32 %s73, %s95
            %s97 = sld [smem:[#allocation7 + %s96]]
            %s98 = sld [smem:[#allocation6 + %s96]]
            %p99 = scmp.eq.s32.totalorder %s98, 0
            %p100 = scmp.lt.s32.totalorder %s95, 0
            %s101 = ssub.s32 0, %s95
            %s102 = scalar_select %p100, %s101, %s95
            %s103 = sand.u32 %s102, 1
            %s104 = ssub.s32 0, %s103
            %s105 = scalar_select %p100, %s104, %s103
            %p106 = scmp.ne.s32.totalorder %s105, 0
            %p107 = scmp.lt.s32.totalorder %s105, 0
            %p108 = pnand %p107, %p106
            %p109 = pneg %p108
            %s110 = sadd.s32 %s105, 2
            %s111 = scalar_select %p109, %s110, %s105
            // Predicated region
            $region24: #{_unbatch_and_pad_impl.1} parent=22 // pred_check
              %p112 = pneg %p99
            $region25: #{_unbatch_and_pad_impl.1} parent=22 // pred_check_branch
              %114 = sbr.rel (%p112) target = $region27
            $region26: #{_unbatch_and_pad_impl.1} parent=22 // pred_region
              %s115 = smul.u32 %s95, 8
              %s116 = scalar_lea.vmem %s63, %s115 [#allocation8]
              %s117 = scalar_lea.sflag [#allocation3], %s111
              %s118 = smul.u32 8, 1
              %s119 = sshll.u32 %s118, 4
              %120 = dma.done %s117, %s119
              %v121 = vstv %s97
              %vm122 = vcmp.lt.s32.totalorder %v66, %v121
              %v123 = vld [vmem:[%s116] sm:$0xff]
              %v124 = vsel %vm122, 1, 0
              %vm125 = vcmp.eq.s32.totalorder %v124, 1
              %v126 = vsel %vm125, %v123, 0.0
              %127 = vst [vmem:[%s116] sm:$0xff] %v126
            $region27: #{_unbatch_and_pad_impl.1} parent=22 // pred_fallthru
              _
          $region23: #{_unbatch_and_pad_impl.1} parent=16 // pred_fallthru
            _
          // Predicated region
          $region28: #{_unbatch_and_pad_impl.1} parent=16 // pred_check
            %p128 = pneg %p90
          $region29: #{_unbatch_and_pad_impl.1} parent=16 // pred_check_branch
            %130 = sbr.rel (%p128) target = $region31
          $region30: #{_unbatch_and_pad_impl.1} parent=16 // pred_region
            %s131 = scalar_lea.vmem %s3, %s75
            %s132 = smul.u32 %s68, 8
            %s133 = scalar_lea.vmem %s63, %s132 [#allocation8]
            %s134 = scalar_lea.sflag [#allocation3], %s89
            %p136 = scmp.lt.u32.totalorder 8, 8
            %p137 = pneg %p136
            // Predicated region
            $region32: #{_unbatch_and_pad_impl.1} parent=30 // pred_check
              _
            $region33: #{_unbatch_and_pad_impl.1} parent=30 // pred_check_branch
              %139 = sbr.rel (%p136) target = $region35
            $region34: #{_unbatch_and_pad_impl.1} parent=30 // pred_region
              %s154 = sand.u32 8, 7
              %p155 = scmp.eq.s32.totalorder %s154, 0
              // Predicated region
              $region47: #{_unbatch_and_pad_impl.1} parent=34 // pred_check
                %p156 = pneg %p155
              $region48: #{_unbatch_and_pad_impl.1} parent=34 // pred_check_branch
                %158 = sbr.rel (%p156) target = $region50
              $region49: #{_unbatch_and_pad_impl.1} parent=34 // pred_region
                loop: start=0, step=1, limit=1
                $region51: #{_unbatch_and_pad_impl.1} parent=49 // loop_pre_header
                  _
                $region52: #{_unbatch_and_pad_impl.1} parent=49 // loop_header
                  %s160 = sphi 0, %s164
                  %p161 = scmp.ge.s32.totalorder %s160, 1
                  %s165 = sphi %s131, %s131
                  %s166 = sphi %s133, %s133
                $region53: #{_unbatch_and_pad_impl.1} parent=49 // loop_header_branch
                  %163 = sbr.rel (%p161) target = $region57
                $region54: #{_unbatch_and_pad_impl.1} parent=49 // loop_body
                  %v167 = vld [vmem:[%s165] sm:$0xff]
                  %168 = vst [vmem:[%s166] sm:$0xff] %v167
                $region55: #{_unbatch_and_pad_impl.1} parent=49 // loop_footer
                  %s164 = sadd.s32 1, %s160
                $region56: #{_unbatch_and_pad_impl.1} parent=49 // loop_footer_branch
                  %159 = sbr.rel target = $region52
                $region57: #{_unbatch_and_pad_impl.1} parent=49 // loop_exit
                  _
              $region50: #{_unbatch_and_pad_impl.1} parent=34 // pred_fallthru
                _
              %p169 = pneg %p155
              // Predicated region
              $region58: #{_unbatch_and_pad_impl.1} parent=34 // pred_check
                _
              $region59: #{_unbatch_and_pad_impl.1} parent=34 // pred_check_branch
                %171 = sbr.rel (%p155) target = $region61
              $region60: #{_unbatch_and_pad_impl.1} parent=34 // pred_region
                %s172 = sand.u32 8, 7
              $region61: #{_unbatch_and_pad_impl.1} parent=34 // pred_fallthru
                _
            $region35: #{_unbatch_and_pad_impl.1} parent=30 // pred_fallthru
              _
            // Predicated region
            $region36: #{_unbatch_and_pad_impl.1} parent=30 // pred_check
              %p140 = pneg %p136
            $region37: #{_unbatch_and_pad_impl.1} parent=30 // pred_check_branch
              %142 = sbr.rel (%p140) target = $region39
            $region38: #{_unbatch_and_pad_impl.1} parent=30 // pred_region
              %s143 = sshllo.u32 0, 8
              loop: start=0, step=1, limit=1
              $region40: #{_unbatch_and_pad_impl.1} parent=38 // loop_pre_header
                _
              $region41: #{_unbatch_and_pad_impl.1} parent=38 // loop_header
                %s145 = sphi 0, %s149
                %p146 = scmp.ge.s32.totalorder %s145, 1
                %s150 = sphi %s131, %s131
                %s151 = sphi %s133, %s133
              $region42: #{_unbatch_and_pad_impl.1} parent=38 // loop_header_branch
                %148 = sbr.rel (%p146) target = $region46
              $region43: #{_unbatch_and_pad_impl.1} parent=38 // loop_body
                %v152 = vld [vmem:[%s150] sm:%s143]
                %153 = vst [vmem:[%s151] sm:%s143] %v152
              $region44: #{_unbatch_and_pad_impl.1} parent=38 // loop_footer
                %s149 = sadd.s32 1, %s145
              $region45: #{_unbatch_and_pad_impl.1} parent=38 // loop_footer_branch
                %144 = sbr.rel target = $region41
              $region46: #{_unbatch_and_pad_impl.1} parent=38 // loop_exit
                _
            $region39: #{_unbatch_and_pad_impl.1} parent=30 // pred_fallthru
              _
            // Predicated region
            $region62: #{_unbatch_and_pad_impl.1} parent=30 // pred_check
              _
            $region63: #{_unbatch_and_pad_impl.1} parent=30 // pred_check_branch
              %175 = sbr.rel (0) target = $region65
            $region64: #{_unbatch_and_pad_impl.1} parent=30 // pred_region
              %176 = vsyncadd %s134, 128
            $region65: #{_unbatch_and_pad_impl.1} parent=30 // pred_fallthru
              _
          $region31: #{_unbatch_and_pad_impl.1} parent=16 // pred_fallthru
            _
          %p177 = scmp.ne.s32.totalorder %s76, 0
          // Predicated region
          $region66: #{_unbatch_and_pad_impl.1} parent=16 // pred_check
            %p178 = pneg %p177
          $region67: #{_unbatch_and_pad_impl.1} parent=16 // pred_check_branch
            %180 = sbr.rel (%p178) target = $region69
          $region68: #{_unbatch_and_pad_impl.1} parent=16 // pred_region
            %s181 = ssub.s32 8, %s76
            %s182 = scalar_lea.vmem %s3, %s75
            %s183 = scalar_lea.vmem [#allocation2], %s181
            %s184 = scalar_lea.sflag [#allocation3], %s89
            %p186 = scmp.lt.u32.totalorder 8, 8
            %p187 = pneg %p186
            // Predicated region
            $region70: #{_unbatch_and_pad_impl.1} parent=68 // pred_check
              _
            $region71: #{_unbatch_and_pad_impl.1} parent=68 // pred_check_branch
              %189 = sbr.rel (%p186) target = $region73
            $region72: #{_unbatch_and_pad_impl.1} parent=68 // pred_region
              %s204 = sand.u32 8, 7
              %p205 = scmp.eq.s32.totalorder %s204, 0
              // Predicated region
              $region85: #{_unbatch_and_pad_impl.1} parent=72 // pred_check
                %p206 = pneg %p205
              $region86: #{_unbatch_and_pad_impl.1} parent=72 // pred_check_branch
                %208 = sbr.rel (%p206) target = $region88
              $region87: #{_unbatch_and_pad_impl.1} parent=72 // pred_region
                loop: start=0, step=1, limit=1
                $region89: #{_unbatch_and_pad_impl.1} parent=87 // loop_pre_header
                  _
                $region90: #{_unbatch_and_pad_impl.1} parent=87 // loop_header
                  %s210 = sphi 0, %s214
                  %p211 = scmp.ge.s32.totalorder %s210, 1
                  %s215 = sphi %s182, %s182
                  %s216 = sphi %s183, %s183
                $region91: #{_unbatch_and_pad_impl.1} parent=87 // loop_header_branch
                  %213 = sbr.rel (%p211) target = $region95
                $region92: #{_unbatch_and_pad_impl.1} parent=87 // loop_body
                  %v217 = vld [vmem:[%s215] sm:$0xff]
                  %218 = vst [vmem:[%s216] sm:$0xff] %v217
                $region93: #{_unbatch_and_pad_impl.1} parent=87 // loop_footer
                  %s214 = sadd.s32 1, %s210
                $region94: #{_unbatch_and_pad_impl.1} parent=87 // loop_footer_branch
                  %209 = sbr.rel target = $region90
                $region95: #{_unbatch_and_pad_impl.1} parent=87 // loop_exit
                  _
              $region88: #{_unbatch_and_pad_impl.1} parent=72 // pred_fallthru
                _
              %p219 = pneg %p205
              // Predicated region
              $region96: #{_unbatch_and_pad_impl.1} parent=72 // pred_check
                _
              $region97: #{_unbatch_and_pad_impl.1} parent=72 // pred_check_branch
                %221 = sbr.rel (%p205) target = $region99
              $region98: #{_unbatch_and_pad_impl.1} parent=72 // pred_region
                %s222 = sand.u32 8, 7
              $region99: #{_unbatch_and_pad_impl.1} parent=72 // pred_fallthru
                _
            $region73: #{_unbatch_and_pad_impl.1} parent=68 // pred_fallthru
              _
            // Predicated region
            $region74: #{_unbatch_and_pad_impl.1} parent=68 // pred_check
              %p190 = pneg %p186
            $region75: #{_unbatch_and_pad_impl.1} parent=68 // pred_check_branch
              %192 = sbr.rel (%p190) target = $region77
            $region76: #{_unbatch_and_pad_impl.1} parent=68 // pred_region
              %s193 = sshllo.u32 0, 8
              loop: start=0, step=1, limit=1
              $region78: #{_unbatch_and_pad_impl.1} parent=76 // loop_pre_header
                _
              $region79: #{_unbatch_and_pad_impl.1} parent=76 // loop_header
                %s195 = sphi 0, %s199
                %p196 = scmp.ge.s32.totalorder %s195, 1
                %s200 = sphi %s182, %s182
                %s201 = sphi %s183, %s183
              $region80: #{_unbatch_and_pad_impl.1} parent=76 // loop_header_branch
                %198 = sbr.rel (%p196) target = $region84
              $region81: #{_unbatch_and_pad_impl.1} parent=76 // loop_body
                %v202 = vld [vmem:[%s200] sm:%s193]
                %203 = vst [vmem:[%s201] sm:%s193] %v202
              $region82: #{_unbatch_and_pad_impl.1} parent=76 // loop_footer
                %s199 = sadd.s32 1, %s195
              $region83: #{_unbatch_and_pad_impl.1} parent=76 // loop_footer_branch
                %194 = sbr.rel target = $region79
              $region84: #{_unbatch_and_pad_impl.1} parent=76 // loop_exit
                _
            $region77: #{_unbatch_and_pad_impl.1} parent=68 // pred_fallthru
              _
            // Predicated region
            $region100: #{_unbatch_and_pad_impl.1} parent=68 // pred_check
              _
            $region101: #{_unbatch_and_pad_impl.1} parent=68 // pred_check_branch
              %225 = sbr.rel (0) target = $region103
            $region102: #{_unbatch_and_pad_impl.1} parent=68 // pred_region
              %226 = vsyncadd %s184, 128
            $region103: #{_unbatch_and_pad_impl.1} parent=68 // pred_fallthru
              _
            %s227 = smul.u32 8, 1
            %s228 = sshll.u32 %s227, 4
            %229 = dma.done %s184, %s228
            %v230 = vstv %s77
            %vm231 = vcmp.lt.s32.totalorder %v66, %v230
            %v232 = vld [vmem:[#allocation2 + $0x8] sm:$0xff]
            %v233 = vsel %vm231, 1, 0
            %vm234 = vcmp.eq.s32.totalorder %v233, 1
            %v235 = vsel %vm234, %v232, 0.0
            %s236 = smul.u32 %s68, 8
            %s237 = scalar_lea.vmem %s63, %s236 [#allocation8]
            %238 = vst [vmem:[%s237] sm:$0xff] %v235
          $region69: #{_unbatch_and_pad_impl.1} parent=16 // pred_fallthru
            _
        $region17: #{_unbatch_and_pad_impl.1} parent=11 // loop_footer
          %s72 = sadd.s32 1, %s68
        $region18: #{_unbatch_and_pad_impl.1} parent=11 // loop_footer_branch
          %67 = sbr.rel target = $region14
        $region19: #{_unbatch_and_pad_impl.1} parent=11 // loop_exit
          _
        %s239 = smul.u32 %s27, 2
        %s240 = sld [smem:[#allocation7 + %s239]]
        %s241 = sld [smem:[#allocation6 + %s239]]
        %p242 = scmp.eq.s32.totalorder %s241, 0
        // Predicated region
        $region104: #{_unbatch_and_pad_impl.1} parent=11 // pred_check
          %p243 = pneg %p242
        $region105: #{_unbatch_and_pad_impl.1} parent=11 // pred_check_branch
          %245 = sbr.rel (%p243) target = $region107
        $region106: #{_unbatch_and_pad_impl.1} parent=11 // pred_region
          %s246 = smul.u32 8, 1
          %s247 = sshll.u32 %s246, 4
          %248 = dma.done [#allocation3], %s247
          %v249 = vstv %s240
          %vm250 = vcmp.lt.s32.totalorder %v66, %v249
          %v251 = vld [vmem:[%s63] sm:$0xff]
          %v252 = vsel %vm250, 1, 0
          %vm253 = vcmp.eq.s32.totalorder %v252, 1
          %v254 = vsel %vm253, %v251, 0.0
          %255 = vst [vmem:[%s63] sm:$0xff] %v254
        $region107: #{_unbatch_and_pad_impl.1} parent=11 // pred_fallthru
          _
        %s256 = sadd.s32 %s239, 1
        %s257 = sld [smem:[#allocation7 + %s256]]
        %s258 = sld [smem:[#allocation6 + %s256]]
        %p259 = scmp.eq.s32.totalorder %s258, 0
        // Predicated region
        $region108: #{_unbatch_and_pad_impl.1} parent=11 // pred_check
          %p260 = pneg %p259
        $region109: #{_unbatch_and_pad_impl.1} parent=11 // pred_check_branch
          %262 = sbr.rel (%p260) target = $region111
        $region110: #{_unbatch_and_pad_impl.1} parent=11 // pred_region
          %s263 = scalar_lea.vmem %s63, 8 [#allocation8]
          %s264 = scalar_lea.sflag [#allocation3], 1
          %s265 = smul.u32 8, 1
          %s266 = sshll.u32 %s265, 4
          %267 = dma.done %s264, %s266
          %v268 = vstv %s257
          %vm269 = vcmp.lt.s32.totalorder %v66, %v268
          %v270 = vld [vmem:[%s263] sm:$0xff]
          %v271 = vsel %vm269, 1, 0
          %vm272 = vcmp.eq.s32.totalorder %v271, 1
          %v273 = vsel %vm272, %v270, 0.0
          %274 = vst [vmem:[%s263] sm:$0xff] %v273
        $region111: #{_unbatch_and_pad_impl.1} parent=11 // pred_fallthru
          _
        %s275 = sand.u32 %s36, 1
        %s276 = scalar_lea.sflag [#allocation9], %s275
        %s277 = sand.u32 %s36, 1
        %s278 = smul.addr %s277, 16
        %s279 = scalar_lea.vmem [#allocation8], %s278
        // Predicated region
        $region112: #{_unbatch_and_pad_impl.1} parent=11 // pred_check
          %p280 = pneg %p42
        $region113: #{_unbatch_and_pad_impl.1} parent=11 // pred_check_branch
          %282 = sbr.rel (%p280) target = $region115
        $region114: #{_unbatch_and_pad_impl.1} parent=11 // pred_region
          %s283 = smul.u32 2, %s27
          %s285 = ssub.s32 256, 256
          %286 = vsyncadd %s276, %s285
          %s287 = smul.addr %s283, 128
          %s288 = scalar_lea.hbm %s4, %s287
          %s289 = sshll.u32 %s279, 4
          %s290 = int_to_ptr.vmem [resolvable:$true] %s289
          %295 = dma.vmem_to_hbm [thread:$0]  %s290, 256, %s288, %s276, 128, 128, 8
        $region115: #{_unbatch_and_pad_impl.1} parent=11 // pred_fallthru
          _
      $region12: #{_unbatch_and_pad_impl.1} parent=5 // pred_fallthru
        _
      %p296 = scmp.le.s32.totalorder 1, %s27
      // Predicated region
      $region116: #{_unbatch_and_pad_impl.1} parent=5 // pred_check
        %p297 = pneg %p296
      $region117: #{_unbatch_and_pad_impl.1} parent=5 // pred_check_branch
        %299 = sbr.rel (%p297) target = $region119
      $region118: #{_unbatch_and_pad_impl.1} parent=5 // pred_region
        %s300 = ssub.s32 %s27, 1
        // Predicated region
        $region120: #{_unbatch_and_pad_impl.1} parent=118 // pred_check
          %p301 = pneg %p48
        $region121: #{_unbatch_and_pad_impl.1} parent=118 // pred_check_branch
          %303 = sbr.rel (%p301) target = $region123
        $region122: #{_unbatch_and_pad_impl.1} parent=118 // pred_region
          %s304 = sand.u32 %s39, 1
          %s305 = scalar_lea.sflag [#allocation9], %s304
          %s306 = sand.u32 %s39, 1
          %s307 = smul.addr %s306, 16
          %s308 = scalar_lea.vmem [#allocation8], %s307
          %309 = dma.done %s305, 256
        $region123: #{_unbatch_and_pad_impl.1} parent=118 // pred_fallthru
          _
      $region119: #{_unbatch_and_pad_impl.1} parent=5 // pred_fallthru
        _
    $region6: #{_unbatch_and_pad_impl.1} parent=1 // loop_footer
      %s31 = sadd.s32 1, %s27
    $region7: #{_unbatch_and_pad_impl.1} parent=1 // loop_footer_branch
      %26 = sbr.rel target = $region3
    $region8: #{_unbatch_and_pad_impl.1} parent=1 // loop_exit
      _
    %310 = vsyncpa [#allocation9], 1
    %s311 = scalar_lea.sflag [#allocation9], 1
    %312 = vsyncpa %s311, 1
  %313 = vsyncmov [#allocation3]
  %s314 = vpop.sfrf %313
  %p315 = scmp.eq.s32.totalorder %s314, 0
  %p316 = pneg %p315
  %318 = shalt.err (%p316)
  %s319 = scalar_lea.sflag [#allocation3], 1
  %320 = vsyncmov %s319
  %s321 = vpop.sfrf %320
  %p322 = scmp.eq.s32.totalorder %s321, 0
  %p323 = pneg %p322
  %325 = shalt.err (%p323)

</llo_original>
